<compile_context>
chip_gen: v5e
topology: v5e:2x2
jax: 0.10.0
libtpu: 0.0.40
codegen_flags: <defaults>
</compile_context>

<pallas_src>
import functools

import jax
import jax.numpy as jnp
from jax.experimental import pallas as pl
from jax.experimental.pallas import tpu as pltpu

LANE = 128  # lane-dense padded width for every feature dimension

_VMEM = pl.BlockSpec(memory_space=pltpu.MemorySpace.VMEM)


# ------------------------------ fused kernel -------------------------------

def _ae_fused_kernel(skes_ref, afts_ref, lpe_ref,
                     w_se_ref, b_se_ref,
                     w_te_s_ref, w_te_a_ref, b_te_ref,
                     w_td_s_ref, b_td_s_ref, w_td_a_ref, b_td_a_ref,
                     w_sd_ref, b_sd_ref,
                     loss_ref,
                     *, n_rows, d_ske, aft_dim):
    skes = skes_ref[...]          # (N, 128)  true width d_ske, rest zero
    afts = afts_ref[...]          # (N, 128)  true width aft_dim, rest zero
    lpe = lpe_ref[...]            # (N, 128)  true width d_ske, rest zero

    # --- skeletal encoder: tanh((skes + lpe) @ W_se + b_se) ---------------
    fe = jnp.tanh(
        jnp.dot(skes + lpe, w_se_ref[...], preferred_element_type=jnp.float32)
        + b_se_ref[...])                                   # (N, 128), cols>=dim are 0

    # --- concat + temporal encoder, concat folded into split matmuls -----
    te = jnp.tanh(
        jnp.dot(fe, w_te_s_ref[...], preferred_element_type=jnp.float32)
        + jnp.dot(afts, w_te_a_ref[...], preferred_element_type=jnp.float32)
        + b_te_ref[...])                                   # (N, 128), cols>=hidden are 0

    # --- temporal decoder; torch.split folded into split weights ---------
    ske_part = (jnp.dot(te, w_td_s_ref[...], preferred_element_type=jnp.float32)
                + b_td_s_ref[...])                         # (N, 128), cols>=dim are 0
    aft_part = (jnp.dot(te, w_td_a_ref[...], preferred_element_type=jnp.float32)
                + b_td_a_ref[...])                         # (N, 128), cols>=aft_dim are 0

    # --- affective loss: MSE(tanh(aft_part), afts) ------------------------
    # Padded lanes are 0 on both sides (tanh(0)=0), so the sum is exact; divide
    # by the TRUE element count, not the padded block size.
    d_a = jnp.tanh(aft_part) - afts
    loss_aft = jnp.sum(d_a * d_a) * (1.0 / jnp.float32(n_rows * aft_dim))

    # --- skeletal decoder + loss ------------------------------------------
    sd = (jnp.dot(ske_part, w_sd_ref[...], preferred_element_type=jnp.float32)
          + b_sd_ref[...] + lpe)                           # (N, 128), cols>=d_ske are 0
    d_s = sd - skes
    loss_ske = jnp.sum(d_s * d_s) * (1.0 / jnp.float32(n_rows * d_ske))

    loss_ref[...] = (loss_aft + loss_ske).reshape(1, 1)


# ------------------------------ glue helpers -------------------------------

def _pad_cols(x, width):
    """Zero-pad last dim of a 2-D array up to `width` lanes."""
    pad = width - x.shape[1]
    if pad == 0:
        return x.astype(jnp.float32)
    return jnp.pad(x.astype(jnp.float32), ((0, 0), (0, pad)))


def _embed(w, rows, cols):
    """Place a small matrix into the top-left of a zero (rows, cols) matrix."""
    out = jnp.zeros((rows, cols), jnp.float32)
    return out.at[: w.shape[0], : w.shape[1]].set(w.astype(jnp.float32))


# --------------------------------- model -----------------------------------

class AEPallas:
    def __init__(self, d_ske, dim, aft_dim, hidden, key,
                 use_skeletal_feature=1, use_affective_feature=1):
        assert max(d_ske, dim, aft_dim, hidden) <= LANE
        # TODO(synk): only the default both-features-on config is implemented as
        # the fused kernel; the skeletal-only / affective-only flag combos of the
        # reference AE are not exercised here (their synthetic sub-module shapes
        # would differ anyway).
        assert use_skeletal_feature == 1 and use_affective_feature == 1

        self.d_ske = d_ske
        self.dim = dim                      # tempo_encoder.dim
        self.aft_dim = aft_dim
        self.hidden = hidden
        self.input_dim = dim + aft_dim      # tempo_encoder.input_dim
        self.use_skeletal_feature = use_skeletal_feature
        self.use_affective_feature = use_affective_feature

        ks = jax.random.split(key, 8)
        s = 0.1
        w_se = s * jax.random.normal(ks[0], (d_ske, dim), jnp.float32)
        b_se = s * jax.random.normal(ks[1], (dim,), jnp.float32)
        w_te = s * jax.random.normal(ks[2], (self.input_dim, hidden), jnp.float32)
        b_te = s * jax.random.normal(ks[3], (hidden,), jnp.float32)
        w_td = s * jax.random.normal(ks[4], (hidden, self.input_dim), jnp.float32)
        b_td = s * jax.random.normal(ks[5], (self.input_dim,), jnp.float32)
        w_sd = s * jax.random.normal(ks[6], (dim, d_ske), jnp.float32)
        b_sd = s * jax.random.normal(ks[7], (d_ske,), jnp.float32)

        # Zero-pad every weight to a lane-dense (128, 128) / (1, 128) layout once.
        # Concat is folded by splitting W_te's rows; decoder split is folded by
        # splitting W_td's columns.
        self.W_se = _embed(w_se, LANE, LANE)
        self.b_se = _embed(b_se.reshape(1, -1), 1, LANE)
        self.W_te_s = _embed(w_te[:dim], LANE, LANE)
        self.W_te_a = _embed(w_te[dim:], LANE, LANE)
        self.b_te = _embed(b_te.reshape(1, -1), 1, LANE)
        self.W_td_s = _embed(w_td[:, :dim], LANE, LANE)
        self.b_td_s = _embed(b_td[:dim].reshape(1, -1), 1, LANE)
        self.W_td_a = _embed(w_td[:, dim:], LANE, LANE)
        self.b_td_a = _embed(b_td[dim:].reshape(1, -1), 1, LANE)
        self.W_sd = _embed(w_sd, LANE, LANE)
        self.b_sd = _embed(b_sd.reshape(1, -1), 1, LANE)

    # --- AE.forward semantics (fully fused) ---
    def forward(self, skes, afts, lpe, length):
        n = skes.shape[0]
        assert n == sum(length)
        # The reference pads to (B, T_max, C) for the temporal encoder and then
        # unpads with torch.cat([x[i, :l] ...]); for a per-frame temporal encoder
        # that round-trip is a no-op, so the flat tensor is used directly.
        skes_p = _pad_cols(skes, LANE)
        afts_p = _pad_cols(afts, LANE)
        lpe_p = _pad_cols(lpe, LANE)

        kern = functools.partial(_ae_fused_kernel,
                                 n_rows=n, d_ske=self.d_ske, aft_dim=self.aft_dim)
        args = (skes_p, afts_p, lpe_p,
                self.W_se, self.b_se,
                self.W_te_s, self.W_te_a, self.b_te,
                self.W_td_s, self.b_td_s, self.W_td_a, self.b_td_a,
                self.W_sd, self.b_sd)
        # TODO(synk): if n_frames grows beyond a few thousand, add a 1-D row grid
        # (tile 512-2048, dimension_semantics=("parallel",), constant index_map
        # for the weights) sized against v7x's 64 MiB VMEM.
        loss = pl.pallas_call(
            kern,
            out_shape=jax.ShapeDtypeStruct((1, 1), jnp.float32),
            in_specs=[_VMEM] * len(args),
            out_specs=_VMEM,
        )(*args)
        return loss[0, 0]


# --------------------------------- driver ----------------------------------

if __name__ == "__main__":
    key = jax.random.PRNGKey(0)
    k_in, k_par = jax.random.split(key)

    D_SKE, DIM, AFT_DIM, HIDDEN = 24, 16, 8, 32
    length = (8, 6)                  # static per-sequence frame counts
    n_frames = sum(length)           # 14 total frames

    k1, k2, k3 = jax.random.split(k_in, 3)
    skes = jax.random.normal(k1, (n_frames, D_SKE), jnp.float32)
    afts = jax.random.normal(k2, (n_frames, AFT_DIM), jnp.float32)
    lpe = jax.random.normal(k3, (n_frames, D_SKE), jnp.float32)

    model = AEPallas(D_SKE, DIM, AFT_DIM, HIDDEN, k_par,
                     use_skeletal_feature=1, use_affective_feature=1)

    loss = model.forward(skes, afts, lpe, length)
    loss = jax.block_until_ready(loss)
    assert loss.shape == () and jnp.isfinite(loss)
    print("KERNEL_OK")
</pallas_src>

<mosaic_0001>
module attributes {stable_mosaic.version = 11 : i64} {
  func.func @_ae_fused_kernel(%arg0: memref<14x128xf32, #tpu.memory_space<vmem>>, %arg1: memref<14x128xf32, #tpu.memory_space<vmem>>, %arg2: memref<14x128xf32, #tpu.memory_space<vmem>>, %arg3: memref<128x128xf32, #tpu.memory_space<vmem>>, %arg4: memref<1x128xf32, #tpu.memory_space<vmem>>, %arg5: memref<128x128xf32, #tpu.memory_space<vmem>>, %arg6: memref<128x128xf32, #tpu.memory_space<vmem>>, %arg7: memref<1x128xf32, #tpu.memory_space<vmem>>, %arg8: memref<128x128xf32, #tpu.memory_space<vmem>>, %arg9: memref<1x128xf32, #tpu.memory_space<vmem>>, %arg10: memref<128x128xf32, #tpu.memory_space<vmem>>, %arg11: memref<1x128xf32, #tpu.memory_space<vmem>>, %arg12: memref<128x128xf32, #tpu.memory_space<vmem>>, %arg13: memref<1x128xf32, #tpu.memory_space<vmem>>, %arg14: memref<1x1xf32, #tpu.memory_space<vmem>>) attributes {dimension_semantics = [], scalar_prefetch = 0 : i64, scratch_operands = 0 : i64, tpu.core_type = #tpu.core_type<tc>} {
    %c0 = arith.constant 0 : index
    %c0_0 = arith.constant 0 : index
    %0 = vector.load %arg0[%c0, %c0_0] : memref<14x128xf32, #tpu.memory_space<vmem>>, vector<14x128xf32>
    %c0_1 = arith.constant 0 : index
    %c0_2 = arith.constant 0 : index
    %1 = vector.load %arg1[%c0_1, %c0_2] : memref<14x128xf32, #tpu.memory_space<vmem>>, vector<14x128xf32>
    %c0_3 = arith.constant 0 : index
    %c0_4 = arith.constant 0 : index
    %2 = vector.load %arg2[%c0_3, %c0_4] : memref<14x128xf32, #tpu.memory_space<vmem>>, vector<14x128xf32>
    %3 = arith.addf %0, %2 : vector<14x128xf32>
    %c0_5 = arith.constant 0 : index
    %c0_6 = arith.constant 0 : index
    %4 = vector.load %arg3[%c0_5, %c0_6] : memref<128x128xf32, #tpu.memory_space<vmem>>, vector<128x128xf32>
    %cst = arith.constant dense<0.000000e+00> : vector<14x128xf32>
    %5 = tpu.matmul %3, %4, %cst {dimension_numbers = #tpu.dot_dimension_numbers<[1], [0], [0], [1], [0, 0, 1, 1], [], []>} : vector<14x128xf32>, vector<128x128xf32>, vector<14x128xf32> -> vector<14x128xf32>
    %c0_7 = arith.constant 0 : index
    %c0_8 = arith.constant 0 : index
    %6 = vector.load %arg4[%c0_7, %c0_8] : memref<1x128xf32, #tpu.memory_space<vmem>>, vector<1x128xf32>
    %7 = vector.broadcast %6 : vector<1x128xf32> to vector<14x128xf32>
    %8 = arith.addf %5, %7 : vector<14x128xf32>
    %9 = math.tanh %8 : vector<14x128xf32>
    %c0_9 = arith.constant 0 : index
    %c0_10 = arith.constant 0 : index
    %10 = vector.load %arg5[%c0_9, %c0_10] : memref<128x128xf32, #tpu.memory_space<vmem>>, vector<128x128xf32>
    %cst_11 = arith.constant dense<0.000000e+00> : vector<14x128xf32>
    %11 = tpu.matmul %9, %10, %cst_11 {dimension_numbers = #tpu.dot_dimension_numbers<[1], [0], [0], [1], [0, 0, 1, 1], [], []>} : vector<14x128xf32>, vector<128x128xf32>, vector<14x128xf32> -> vector<14x128xf32>
    %c0_12 = arith.constant 0 : index
    %c0_13 = arith.constant 0 : index
    %12 = vector.load %arg6[%c0_12, %c0_13] : memref<128x128xf32, #tpu.memory_space<vmem>>, vector<128x128xf32>
    %cst_14 = arith.constant dense<0.000000e+00> : vector<14x128xf32>
    %13 = tpu.matmul %1, %12, %cst_14 {dimension_numbers = #tpu.dot_dimension_numbers<[1], [0], [0], [1], [0, 0, 1, 1], [], []>} : vector<14x128xf32>, vector<128x128xf32>, vector<14x128xf32> -> vector<14x128xf32>
    %14 = arith.addf %11, %13 : vector<14x128xf32>
    %c0_15 = arith.constant 0 : index
    %c0_16 = arith.constant 0 : index
    %15 = vector.load %arg7[%c0_15, %c0_16] : memref<1x128xf32, #tpu.memory_space<vmem>>, vector<1x128xf32>
    %16 = vector.broadcast %15 : vector<1x128xf32> to vector<14x128xf32>
    %17 = arith.addf %14, %16 : vector<14x128xf32>
    %18 = math.tanh %17 : vector<14x128xf32>
    %c0_17 = arith.constant 0 : index
    %c0_18 = arith.constant 0 : index
    %19 = vector.load %arg8[%c0_17, %c0_18] : memref<128x128xf32, #tpu.memory_space<vmem>>, vector<128x128xf32>
    %cst_19 = arith.constant dense<0.000000e+00> : vector<14x128xf32>
    %20 = tpu.matmul %18, %19, %cst_19 {dimension_numbers = #tpu.dot_dimension_numbers<[1], [0], [0], [1], [0, 0, 1, 1], [], []>} : vector<14x128xf32>, vector<128x128xf32>, vector<14x128xf32> -> vector<14x128xf32>
    %c0_20 = arith.constant 0 : index
    %c0_21 = arith.constant 0 : index
    %21 = vector.load %arg9[%c0_20, %c0_21] : memref<1x128xf32, #tpu.memory_space<vmem>>, vector<1x128xf32>
    %22 = vector.broadcast %21 : vector<1x128xf32> to vector<14x128xf32>
    %23 = arith.addf %20, %22 : vector<14x128xf32>
    %c0_22 = arith.constant 0 : index
    %c0_23 = arith.constant 0 : index
    %24 = vector.load %arg10[%c0_22, %c0_23] : memref<128x128xf32, #tpu.memory_space<vmem>>, vector<128x128xf32>
    %cst_24 = arith.constant dense<0.000000e+00> : vector<14x128xf32>
    %25 = tpu.matmul %18, %24, %cst_24 {dimension_numbers = #tpu.dot_dimension_numbers<[1], [0], [0], [1], [0, 0, 1, 1], [], []>} : vector<14x128xf32>, vector<128x128xf32>, vector<14x128xf32> -> vector<14x128xf32>
    %c0_25 = arith.constant 0 : index
    %c0_26 = arith.constant 0 : index
    %26 = vector.load %arg11[%c0_25, %c0_26] : memref<1x128xf32, #tpu.memory_space<vmem>>, vector<1x128xf32>
    %27 = vector.broadcast %26 : vector<1x128xf32> to vector<14x128xf32>
    %28 = arith.addf %25, %27 : vector<14x128xf32>
    %29 = math.tanh %28 : vector<14x128xf32>
    %30 = arith.subf %29, %1 : vector<14x128xf32>
    %31 = arith.mulf %30, %30 : vector<14x128xf32>
    %32 = vector.shape_cast %31 : vector<14x128xf32> to vector<1x14x128xf32>
    %cst_27 = arith.constant dense<0.000000e+00> : vector<1xf32>
    %33 = vector.multi_reduction <add>, %32, %cst_27 [1, 2] : vector<1x14x128xf32> to vector<1xf32>
    %34 = vector.shape_cast %33 : vector<1xf32> to vector<1x1x1xf32>
    %35 = vector.extract %34[0, 0, 0] : f32 from vector<1x1x1xf32>
    %cst_28 = arith.constant 1.000000e+00 : f32
    %cst_29 = arith.constant 1.120000e+02 : f32
    %36 = arith.divf %cst_28, %cst_29 : f32
    %37 = arith.mulf %35, %36 : f32
    %c0_30 = arith.constant 0 : index
    %c0_31 = arith.constant 0 : index
    %38 = vector.load %arg12[%c0_30, %c0_31] : memref<128x128xf32, #tpu.memory_space<vmem>>, vector<128x128xf32>
    %cst_32 = arith.constant dense<0.000000e+00> : vector<14x128xf32>
    %39 = tpu.matmul %23, %38, %cst_32 {dimension_numbers = #tpu.dot_dimension_numbers<[1], [0], [0], [1], [0, 0, 1, 1], [], []>} : vector<14x128xf32>, vector<128x128xf32>, vector<14x128xf32> -> vector<14x128xf32>
    %c0_33 = arith.constant 0 : index
    %c0_34 = arith.constant 0 : index
    %40 = vector.load %arg13[%c0_33, %c0_34] : memref<1x128xf32, #tpu.memory_space<vmem>>, vector<1x128xf32>
    %41 = vector.broadcast %40 : vector<1x128xf32> to vector<14x128xf32>
    %42 = arith.addf %39, %41 : vector<14x128xf32>
    %43 = arith.addf %42, %2 : vector<14x128xf32>
    %44 = arith.subf %43, %0 : vector<14x128xf32>
    %45 = arith.mulf %44, %44 : vector<14x128xf32>
    %46 = vector.shape_cast %45 : vector<14x128xf32> to vector<1x14x128xf32>
    %cst_35 = arith.constant dense<0.000000e+00> : vector<1xf32>
    %47 = vector.multi_reduction <add>, %46, %cst_35 [1, 2] : vector<1x14x128xf32> to vector<1xf32>
    %48 = vector.shape_cast %47 : vector<1xf32> to vector<1x1x1xf32>
    %49 = vector.extract %48[0, 0, 0] : f32 from vector<1x1x1xf32>
    %cst_36 = arith.constant 1.000000e+00 : f32
    %cst_37 = arith.constant 3.360000e+02 : f32
    %50 = arith.divf %cst_36, %cst_37 : f32
    %51 = arith.mulf %49, %50 : f32
    %52 = arith.addf %37, %51 : f32
    %53 = vector.broadcast %52 : f32 to vector<1x1xf32>
    %c0_38 = arith.constant 0 : index
    %c0_39 = arith.constant 0 : index
    %54 = vector.load %arg14[%c0_38, %c0_39] : memref<1x1xf32, #tpu.memory_space<vmem>>, vector<1x1xf32>
    tpu.vector_store %arg14[%c0_38, %c0_39], %53 {strides = array<i32>} : memref<1x1xf32, #tpu.memory_space<vmem>>, vector<1x1xf32>,
    return
  }
}

</mosaic_0001>

<llo_original>
// kernel: tpu_custom_call.1
$region0: #{tpu_custom_call.1}
  #allocation0 [shape = 'u32[]', space=smem, size = 0x4, offset = 0x4, fixed_abs, tag = 'smem constant byte address 0x4 - core index']
  #allocation1 [shape = 'u32[72,128]{1,0:T(1,128)}', space=vmem, size = 0x9000, scoped, tag = 'internal scratch']
  %s0 = inlined_call_operand.hbm [shape: f32[14,128], index: 0, kind: input, shape index: {}]
  %s1 = inlined_call_operand.hbm [shape: f32[14,128], index: 1, kind: input, shape index: {}]
  %s2 = inlined_call_operand.hbm [shape: f32[14,128], index: 2, kind: input, shape index: {}]
  %s3 = inlined_call_operand.hbm [shape: f32[128,128], index: 3, kind: input, shape index: {}]
  %s4 = inlined_call_operand.vmem [shape: f32[1,128], index: 4, kind: input, shape index: {}]
  %s5 = inlined_call_operand.hbm [shape: f32[128,128], index: 5, kind: input, shape index: {}]
  %s6 = inlined_call_operand.hbm [shape: f32[128,128], index: 6, kind: input, shape index: {}]
  %s7 = inlined_call_operand.vmem [shape: f32[1,128], index: 7, kind: input, shape index: {}]
  %s8 = inlined_call_operand.hbm [shape: f32[128,128], index: 8, kind: input, shape index: {}]
  %s9 = inlined_call_operand.vmem [shape: f32[1,128], index: 9, kind: input, shape index: {}]
  %s10 = inlined_call_operand.hbm [shape: f32[128,128], index: 10, kind: input, shape index: {}]
  %s11 = inlined_call_operand.vmem [shape: f32[1,128], index: 11, kind: input, shape index: {}]
  %s12 = inlined_call_operand.hbm [shape: f32[128,128], index: 12, kind: input, shape index: {}]
  %s13 = inlined_call_operand.vmem [shape: f32[1,128], index: 13, kind: input, shape index: {}]
  %s14 = inlined_call_operand.hbm [shape: f32[1,1], index: 14, kind: output, shape index: {}]
  %s15 = sld [smem:[#allocation0]]
  $region102: #{tpu_custom_call.1} parent=0
    _
  %s17 = ssub.s32 1, %s15
  %s18 = scalar_select 0, %s17, %s15
  $region1: #{tpu_custom_call.1} parent=0
    #allocation2 [shape = 'u8[8192]{0}', space=vmem, size = 0x2000, scoped, tag = 'input window, operand 0, single buffered']
    #allocation3 [shape = 's32[1]{0}', space=sflag, size = 0x4, scoped, tag = 'scoped memory for tpu_custom_call.1']
    #allocation4 [shape = 's32[1]{0}', space=sflag, size = 0x4, scoped, tag = 'scoped memory for tpu_custom_call.1']
    #allocation5 [shape = 'u8[8192]{0}', space=vmem, size = 0x2000, scoped, tag = 'input window, operand 1, single buffered']
    #allocation6 [shape = 's32[1]{0}', space=sflag, size = 0x4, scoped, tag = 'scoped memory for tpu_custom_call.1']
    #allocation7 [shape = 'u8[8192]{0}', space=vmem, size = 0x2000, scoped, tag = 'input window, operand 2, single buffered']
    #allocation8 [shape = 'u8[65536]{0}', space=vmem, size = 0x10000, scoped, tag = 'input window, operand 3, single buffered']
    #allocation9 [shape = 's32[1]{0}', space=sflag, size = 0x4, scoped, tag = 'scoped memory for tpu_custom_call.1']
    #allocation10 [shape = 'u8[65536]{0}', space=vmem, size = 0x10000, scoped, tag = 'input window, operand 5, single buffered']
    #allocation11 [shape = 'u8[65536]{0}', space=vmem, size = 0x10000, scoped, tag = 'input window, operand 6, single buffered']
    #allocation12 [shape = 's32[1]{0}', space=sflag, size = 0x4, scoped, tag = 'scoped memory for tpu_custom_call.1']
    #allocation13 [shape = 'u8[65536]{0}', space=vmem, size = 0x10000, scoped, tag = 'input window, operand 8, single buffered']
    #allocation14 [shape = 'u8[65536]{0}', space=vmem, size = 0x10000, scoped, tag = 'input window, operand 10, single buffered']
    #allocation15 [shape = 's32[1]{0}', space=sflag, size = 0x4, scoped, tag = 'scoped memory for tpu_custom_call.1']
    #allocation16 [shape = 'u8[65536]{0}', space=vmem, size = 0x10000, scoped, tag = 'input window, operand 12, single buffered']
    #allocation17 [shape = 'u8[512]{0}', space=vmem, size = 0x400, scoped, tag = 'output window, operand 0, single buffered']
    %19 = vsyncpa [#allocation3], 0
    %20 = vsyncpa [#allocation6], 0
    %21 = vsyncpa [#allocation9], 0
    %22 = vsyncpa [#allocation12], 0
    %23 = vsyncpa [#allocation15], 0
    %24 = vsyncpa [#allocation4], 0
    // Predicated region
    $region2: #{tpu_custom_call.1} parent=1 // pred_check
      _
    $region3: #{tpu_custom_call.1} parent=1 // pred_check_branch
      %26 = sbr.rel (0) target = $region5
    $region4: #{tpu_custom_call.1} parent=1 // pred_region
      %28 = vsyncadd [#allocation3], 0
      %s29 = sshll.u32 %s0, 4
      %s30 = int_to_ptr.hbm [resolvable:$true] %s29
      %s31 = sshll.u32 [#allocation2], 4
      %s32 = int_to_ptr.vmem [resolvable:$true] %s31
      %37 = dma.hbm_to_vmem [thread:$0]  %s30, 256, %s32, [#allocation3], 128, 128, 8
    $region5: #{tpu_custom_call.1} parent=1 // pred_fallthru
      _
    // Predicated region
    $region6: #{tpu_custom_call.1} parent=1 // pred_check
      _
    $region7: #{tpu_custom_call.1} parent=1 // pred_check_branch
      %39 = sbr.rel (0) target = $region9
    $region8: #{tpu_custom_call.1} parent=1 // pred_region
      %41 = vsyncadd [#allocation6], 0
      %s42 = sshll.u32 %s1, 4
      %s43 = int_to_ptr.hbm [resolvable:$true] %s42
      %s44 = sshll.u32 [#allocation5], 4
      %s45 = int_to_ptr.vmem [resolvable:$true] %s44
      %50 = dma.hbm_to_vmem [thread:$0]  %s43, 256, %s45, [#allocation6], 128, 128, 8
    $region9: #{tpu_custom_call.1} parent=1 // pred_fallthru
      _
    // Predicated region
    $region10: #{tpu_custom_call.1} parent=1 // pred_check
      _
    $region11: #{tpu_custom_call.1} parent=1 // pred_check_branch
      %52 = sbr.rel (0) target = $region13
    $region12: #{tpu_custom_call.1} parent=1 // pred_region
      %54 = vsyncadd [#allocation6], 0
      %s55 = sshll.u32 %s2, 4
      %s56 = int_to_ptr.hbm [resolvable:$true] %s55
      %s57 = sshll.u32 [#allocation7], 4
      %s58 = int_to_ptr.vmem [resolvable:$true] %s57
      %63 = dma.hbm_to_vmem [thread:$0]  %s56, 256, %s58, [#allocation6], 128, 128, 8
    $region13: #{tpu_custom_call.1} parent=1 // pred_fallthru
      _
    // Predicated region
    $region14: #{tpu_custom_call.1} parent=1 // pred_check
      _
    $region15: #{tpu_custom_call.1} parent=1 // pred_check_branch
      %65 = sbr.rel (0) target = $region17
    $region16: #{tpu_custom_call.1} parent=1 // pred_region
      %67 = vsyncadd [#allocation9], 0
      %s68 = sshll.u32 %s3, 4
      %s69 = int_to_ptr.hbm [resolvable:$true] %s68
      %s70 = sshll.u32 [#allocation8], 4
      %s71 = int_to_ptr.vmem [resolvable:$true] %s70
      %76 = dma.hbm_to_vmem [thread:$0]  %s69, 2048, %s71, [#allocation9], 128, 128, 8
    $region17: #{tpu_custom_call.1} parent=1 // pred_fallthru
      _
    // Predicated region
    $region18: #{tpu_custom_call.1} parent=1 // pred_check
      _
    $region19: #{tpu_custom_call.1} parent=1 // pred_check_branch
      %78 = sbr.rel (0) target = $region21
    $region20: #{tpu_custom_call.1} parent=1 // pred_region
      _
    $region21: #{tpu_custom_call.1} parent=1 // pred_fallthru
      _
    // Predicated region
    $region22: #{tpu_custom_call.1} parent=1 // pred_check
      _
    $region23: #{tpu_custom_call.1} parent=1 // pred_check_branch
      %80 = sbr.rel (0) target = $region25
    $region24: #{tpu_custom_call.1} parent=1 // pred_region
      %82 = vsyncadd [#allocation9], 0
      %s83 = sshll.u32 %s5, 4
      %s84 = int_to_ptr.hbm [resolvable:$true] %s83
      %s85 = sshll.u32 [#allocation10], 4
      %s86 = int_to_ptr.vmem [resolvable:$true] %s85
      %91 = dma.hbm_to_vmem [thread:$0]  %s84, 2048, %s86, [#allocation9], 128, 128, 8
    $region25: #{tpu_custom_call.1} parent=1 // pred_fallthru
      _
    // Predicated region
    $region26: #{tpu_custom_call.1} parent=1 // pred_check
      _
    $region27: #{tpu_custom_call.1} parent=1 // pred_check_branch
      %93 = sbr.rel (0) target = $region29
    $region28: #{tpu_custom_call.1} parent=1 // pred_region
      %95 = vsyncadd [#allocation12], 0
      %s96 = sshll.u32 %s6, 4
      %s97 = int_to_ptr.hbm [resolvable:$true] %s96
      %s98 = sshll.u32 [#allocation11], 4
      %s99 = int_to_ptr.vmem [resolvable:$true] %s98
      %104 = dma.hbm_to_vmem [thread:$0]  %s97, 2048, %s99, [#allocation12], 128, 128, 8
    $region29: #{tpu_custom_call.1} parent=1 // pred_fallthru
      _
    // Predicated region
    $region30: #{tpu_custom_call.1} parent=1 // pred_check
      _
    $region31: #{tpu_custom_call.1} parent=1 // pred_check_branch
      %106 = sbr.rel (0) target = $region33
    $region32: #{tpu_custom_call.1} parent=1 // pred_region
      _
    $region33: #{tpu_custom_call.1} parent=1 // pred_fallthru
      _
    // Predicated region
    $region34: #{tpu_custom_call.1} parent=1 // pred_check
      _
    $region35: #{tpu_custom_call.1} parent=1 // pred_check_branch
      %108 = sbr.rel (0) target = $region37
    $region36: #{tpu_custom_call.1} parent=1 // pred_region
      %110 = vsyncadd [#allocation12], 0
      %s111 = sshll.u32 %s8, 4
      %s112 = int_to_ptr.hbm [resolvable:$true] %s111
      %s113 = sshll.u32 [#allocation13], 4
      %s114 = int_to_ptr.vmem [resolvable:$true] %s113
      %119 = dma.hbm_to_vmem [thread:$0]  %s112, 2048, %s114, [#allocation12], 128, 128, 8
    $region37: #{tpu_custom_call.1} parent=1 // pred_fallthru
      _
    // Predicated region
    $region38: #{tpu_custom_call.1} parent=1 // pred_check
      _
    $region39: #{tpu_custom_call.1} parent=1 // pred_check_branch
      %121 = sbr.rel (0) target = $region41
    $region40: #{tpu_custom_call.1} parent=1 // pred_region
      _
    $region41: #{tpu_custom_call.1} parent=1 // pred_fallthru
      _
    // Predicated region
    $region42: #{tpu_custom_call.1} parent=1 // pred_check
      _
    $region43: #{tpu_custom_call.1} parent=1 // pred_check_branch
      %123 = sbr.rel (0) target = $region45
    $region44: #{tpu_custom_call.1} parent=1 // pred_region
      %125 = vsyncadd [#allocation15], 0
      %s126 = sshll.u32 %s10, 4
      %s127 = int_to_ptr.hbm [resolvable:$true] %s126
      %s128 = sshll.u32 [#allocation14], 4
      %s129 = int_to_ptr.vmem [resolvable:$true] %s128
      %134 = dma.hbm_to_vmem [thread:$0]  %s127, 2048, %s129, [#allocation15], 128, 128, 8
    $region45: #{tpu_custom_call.1} parent=1 // pred_fallthru
      _
    // Predicated region
    $region46: #{tpu_custom_call.1} parent=1 // pred_check
      _
    $region47: #{tpu_custom_call.1} parent=1 // pred_check_branch
      %136 = sbr.rel (0) target = $region49
    $region48: #{tpu_custom_call.1} parent=1 // pred_region
      _
    $region49: #{tpu_custom_call.1} parent=1 // pred_fallthru
      _
    // Predicated region
    $region50: #{tpu_custom_call.1} parent=1 // pred_check
      _
    $region51: #{tpu_custom_call.1} parent=1 // pred_check_branch
      %138 = sbr.rel (0) target = $region53
    $region52: #{tpu_custom_call.1} parent=1 // pred_region
      %140 = vsyncadd [#allocation15], 0
      %s141 = sshll.u32 %s12, 4
      %s142 = int_to_ptr.hbm [resolvable:$true] %s141
      %s143 = sshll.u32 [#allocation16], 4
      %s144 = int_to_ptr.vmem [resolvable:$true] %s143
      %149 = dma.hbm_to_vmem [thread:$0]  %s142, 2048, %s144, [#allocation15], 128, 128, 8
    $region53: #{tpu_custom_call.1} parent=1 // pred_fallthru
      _
    // Predicated region
    $region54: #{tpu_custom_call.1} parent=1 // pred_check
      _
    $region55: #{tpu_custom_call.1} parent=1 // pred_check_branch
      %151 = sbr.rel (0) target = $region57
    $region56: #{tpu_custom_call.1} parent=1 // pred_region
      _
    $region57: #{tpu_custom_call.1} parent=1 // pred_fallthru
      _
    // Predicated region
    $region58: #{tpu_custom_call.1} parent=1 // pred_check
      _
    $region59: #{tpu_custom_call.1} parent=1 // pred_check_branch
      %153 = sbr.rel (0) target = $region61
    $region60: #{tpu_custom_call.1} parent=1 // pred_region
      %155 = dma.done [#allocation3], 256
    $region61: #{tpu_custom_call.1} parent=1 // pred_fallthru
      _
    // Predicated region
    $region62: #{tpu_custom_call.1} parent=1 // pred_check
      _
    $region63: #{tpu_custom_call.1} parent=1 // pred_check_branch
      %157 = sbr.rel (0) target = $region65
    $region64: #{tpu_custom_call.1} parent=1 // pred_region
      %159 = dma.done [#allocation6], 256
    $region65: #{tpu_custom_call.1} parent=1 // pred_fallthru
      _
    // Predicated region
    $region66: #{tpu_custom_call.1} parent=1 // pred_check
      _
    $region67: #{tpu_custom_call.1} parent=1 // pred_check_branch
      %161 = sbr.rel (0) target = $region69
    $region68: #{tpu_custom_call.1} parent=1 // pred_region
      %163 = dma.done [#allocation6], 256
    $region69: #{tpu_custom_call.1} parent=1 // pred_fallthru
      _
    // Predicated region
    $region70: #{tpu_custom_call.1} parent=1 // pred_check
      _
    $region71: #{tpu_custom_call.1} parent=1 // pred_check_branch
      %165 = sbr.rel (0) target = $region73
    $region72: #{tpu_custom_call.1} parent=1 // pred_region
      %167 = dma.done [#allocation9], 2048
    $region73: #{tpu_custom_call.1} parent=1 // pred_fallthru
      _
    // Predicated region
    $region74: #{tpu_custom_call.1} parent=1 // pred_check
      _
    $region75: #{tpu_custom_call.1} parent=1 // pred_check_branch
      %169 = sbr.rel (0) target = $region77
    $region76: #{tpu_custom_call.1} parent=1 // pred_region
      %171 = dma.done [#allocation9], 2048
    $region77: #{tpu_custom_call.1} parent=1 // pred_fallthru
      _
    // Predicated region
    $region78: #{tpu_custom_call.1} parent=1 // pred_check
      _
    $region79: #{tpu_custom_call.1} parent=1 // pred_check_branch
      %173 = sbr.rel (0) target = $region81
    $region80: #{tpu_custom_call.1} parent=1 // pred_region
      %175 = dma.done [#allocation12], 2048
    $region81: #{tpu_custom_call.1} parent=1 // pred_fallthru
      _
    // Predicated region
    $region82: #{tpu_custom_call.1} parent=1 // pred_check
      _
    $region83: #{tpu_custom_call.1} parent=1 // pred_check_branch
      %177 = sbr.rel (0) target = $region85
    $region84: #{tpu_custom_call.1} parent=1 // pred_region
      %179 = dma.done [#allocation12], 2048
    $region85: #{tpu_custom_call.1} parent=1 // pred_fallthru
      _
    // Predicated region
    $region86: #{tpu_custom_call.1} parent=1 // pred_check
      _
    $region87: #{tpu_custom_call.1} parent=1 // pred_check_branch
      %181 = sbr.rel (0) target = $region89
    $region88: #{tpu_custom_call.1} parent=1 // pred_region
      %183 = dma.done [#allocation15], 2048
    $region89: #{tpu_custom_call.1} parent=1 // pred_fallthru
      _
    // Predicated region
    $region90: #{tpu_custom_call.1} parent=1 // pred_check
      _
    $region91: #{tpu_custom_call.1} parent=1 // pred_check_branch
      %185 = sbr.rel (0) target = $region93
    $region92: #{tpu_custom_call.1} parent=1 // pred_region
      %187 = dma.done [#allocation15], 2048
    $region93: #{tpu_custom_call.1} parent=1 // pred_fallthru
      _
    %v188 = vld [vmem:[#allocation2] sm:$0xff]
    %v189 = vld [vmem:[#allocation2 + $0x8] sm:$0x3f]
    %v190 = vld [vmem:[#allocation5] sm:$0xff]
    %v191 = vld [vmem:[#allocation5 + $0x8] sm:$0x3f]
    %v192 = vld [vmem:[#allocation7] sm:$0xff]
    %v193 = vld [vmem:[#allocation7 + $0x8] sm:$0x3f]
    %v194 = vadd.f32 %v188, %v192
    %v195 = vadd.f32 %v189, %v193
    %v196 = vld [vmem:[#allocation8] sm:$0xff]
    %v197 = vld [vmem:[#allocation8 + $0x8] sm:$0xff]
    %v198 = vld [vmem:[#allocation8 + $0x10] sm:$0xff]
    %v199 = vld [vmem:[#allocation8 + $0x18] sm:$0xff]
    %v200 = vld [vmem:[#allocation8 + $0x20] sm:$0xff]
    %v201 = vld [vmem:[#allocation8 + $0x28] sm:$0xff]
    %v202 = vld [vmem:[#allocation8 + $0x30] sm:$0xff]
    %v203 = vld [vmem:[#allocation8 + $0x38] sm:$0xff]
    %v204 = vld [vmem:[#allocation8 + $0x40] sm:$0xff]
    %v205 = vld [vmem:[#allocation8 + $0x48] sm:$0xff]
    %v206 = vld [vmem:[#allocation8 + $0x50] sm:$0xff]
    %v207 = vld [vmem:[#allocation8 + $0x58] sm:$0xff]
    %v208 = vld [vmem:[#allocation8 + $0x60] sm:$0xff]
    %v209 = vld [vmem:[#allocation8 + $0x68] sm:$0xff]
    %v210 = vld [vmem:[#allocation8 + $0x70] sm:$0xff]
    %v211 = vld [vmem:[#allocation8 + $0x78] sm:$0xff]
    %v212 = vld [vmem:[%s4] sm:$0x1]
    %v214 = vperm.slane %v212, 0
    %216 = vmatpush.msra.mxu0 %v211
    %217 = vmatpush.msra.mxu0 %v210
    %218 = vmatpush.msra.mxu0 %v209
    %219 = vmatpush.msra.mxu0 %v208
    %220 = vmatpush.msra.mxu0 %v207
    %221 = vmatpush.msra.mxu0 %v206
    %222 = vmatpush.msra.mxu0 %v205
    %223 = vmatpush.msra.mxu0 %v204
    %224 = vmatpush.msra.mxu0 %v203
    %225 = vmatpush.msra.mxu0 %v202
    %226 = vmatpush.msra.mxu0 %v201
    %227 = vmatpush.msra.mxu0 %v200
    %228 = vmatpush.msra.mxu0 %v199
    %229 = vmatpush.msra.mxu0 %v198
    %230 = vmatpush.msra.mxu0 %v197
    %231 = vmatpush.msra.mxu0 %v196
    %232 = vmatmul.f32.gmra.mxu0 %v194
    %v233 = vpop.f32.mrf.mxu0
    %v234 = vadd.f32 %v214, %v233
    %235 = vmatmul.f32.gmra.mxu0 %v195
    %v236 = vpop.f32.mrf.mxu0
    %v237 = vadd.f32 %v214, %v236
    %238 = vdwg.mxu0
    %v239 = vtanh.pop %v234
    %v240 = vtanh.pop %v237
    %v241 = vld [vmem:[#allocation10] sm:$0xff]
    %v242 = vld [vmem:[#allocation10 + $0x8] sm:$0xff]
    %v243 = vld [vmem:[#allocation10 + $0x10] sm:$0xff]
    %v244 = vld [vmem:[#allocation10 + $0x18] sm:$0xff]
    %v245 = vld [vmem:[#allocation10 + $0x20] sm:$0xff]
    %v246 = vld [vmem:[#allocation10 + $0x28] sm:$0xff]
    %v247 = vld [vmem:[#allocation10 + $0x30] sm:$0xff]
    %v248 = vld [vmem:[#allocation10 + $0x38] sm:$0xff]
    %v249 = vld [vmem:[#allocation10 + $0x40] sm:$0xff]
    %v250 = vld [vmem:[#allocation10 + $0x48] sm:$0xff]
    %v251 = vld [vmem:[#allocation10 + $0x50] sm:$0xff]
    %v252 = vld [vmem:[#allocation10 + $0x58] sm:$0xff]
    %v253 = vld [vmem:[#allocation10 + $0x60] sm:$0xff]
    %v254 = vld [vmem:[#allocation10 + $0x68] sm:$0xff]
    %v255 = vld [vmem:[#allocation10 + $0x70] sm:$0xff]
    %v256 = vld [vmem:[#allocation10 + $0x78] sm:$0xff]
    %v257 = vld [vmem:[#allocation11] sm:$0xff]
    %v258 = vld [vmem:[#allocation11 + $0x8] sm:$0xff]
    %v259 = vld [vmem:[#allocation11 + $0x10] sm:$0xff]
    %v260 = vld [vmem:[#allocation11 + $0x18] sm:$0xff]
    %v261 = vld [vmem:[#allocation11 + $0x20] sm:$0xff]
    %v262 = vld [vmem:[#allocation11 + $0x28] sm:$0xff]
    %v263 = vld [vmem:[#allocation11 + $0x30] sm:$0xff]
    %v264 = vld [vmem:[#allocation11 + $0x38] sm:$0xff]
    %v265 = vld [vmem:[#allocation11 + $0x40] sm:$0xff]
    %v266 = vld [vmem:[#allocation11 + $0x48] sm:$0xff]
    %v267 = vld [vmem:[#allocation11 + $0x50] sm:$0xff]
    %v268 = vld [vmem:[#allocation11 + $0x58] sm:$0xff]
    %v269 = vld [vmem:[#allocation11 + $0x60] sm:$0xff]
    %v270 = vld [vmem:[#allocation11 + $0x68] sm:$0xff]
    %v271 = vld [vmem:[#allocation11 + $0x70] sm:$0xff]
    %v272 = vld [vmem:[#allocation11 + $0x78] sm:$0xff]
    %273 = vmatpush.msra.mxu0 %v272
    %274 = vmatpush.msra.mxu0 %v271
    %275 = vmatpush.msra.mxu0 %v270
    %276 = vmatpush.msra.mxu0 %v269
    %277 = vmatpush.msra.mxu0 %v268
    %278 = vmatpush.msra.mxu0 %v267
    %279 = vmatpush.msra.mxu0 %v266
    %280 = vmatpush.msra.mxu0 %v265
    %281 = vmatpush.msra.mxu0 %v264
    %282 = vmatpush.msra.mxu0 %v263
    %283 = vmatpush.msra.mxu0 %v262
    %284 = vmatpush.msra.mxu0 %v261
    %285 = vmatpush.msra.mxu0 %v260
    %286 = vmatpush.msra.mxu0 %v259
    %287 = vmatpush.msra.mxu0 %v258
    %288 = vmatpush.msra.mxu0 %v257
    %289 = vmatmul.f32.gmra.mxu0 %v190
    %v290 = vpop.f32.mrf.mxu0
    %v291 = vadd.f32 0.0, %v290
    %292 = vmatmul.f32.gmra.mxu0 %v191
    %v293 = vpop.f32.mrf.mxu0
    %v294 = vadd.f32 0.0, %v293
    %295 = vdwg.mxu0
    %296 = vmatpush.msra.mxu0 %v256
    %297 = vmatpush.msra.mxu0 %v255
    %298 = vmatpush.msra.mxu0 %v254
    %299 = vmatpush.msra.mxu0 %v253
    %300 = vmatpush.msra.mxu0 %v252
    %301 = vmatpush.msra.mxu0 %v251
    %302 = vmatpush.msra.mxu0 %v250
    %303 = vmatpush.msra.mxu0 %v249
    %304 = vmatpush.msra.mxu0 %v248
    %305 = vmatpush.msra.mxu0 %v247
    %306 = vmatpush.msra.mxu0 %v246
    %307 = vmatpush.msra.mxu0 %v245
    %308 = vmatpush.msra.mxu0 %v244
    %309 = vmatpush.msra.mxu0 %v243
    %310 = vmatpush.msra.mxu0 %v242
    %311 = vmatpush.msra.mxu0 %v241
    %312 = vmatmul.f32.gmra.mxu0 %v239
    %v313 = vpop.f32.mrf.mxu0
    %v314 = vadd.f32 %v291, %v313
    %315 = vmatmul.f32.gmra.mxu0 %v240
    %v316 = vpop.f32.mrf.mxu0
    %v317 = vadd.f32 %v294, %v316
    %318 = vdwg.mxu0
    %v319 = vld [vmem:[%s7] sm:$0x1]
    %v321 = vperm.slane %v319, 0
    %v323 = vadd.f32 %v314, %v321
    %v324 = vadd.f32 %v317, %v321
    %v325 = vtanh.pop %v323
    %v326 = vtanh.pop %v324
    %v327 = vld [vmem:[#allocation13] sm:$0xff]
    %v328 = vld [vmem:[#allocation13 + $0x8] sm:$0xff]
    %v329 = vld [vmem:[#allocation13 + $0x10] sm:$0xff]
    %v330 = vld [vmem:[#allocation13 + $0x18] sm:$0xff]
    %v331 = vld [vmem:[#allocation13 + $0x20] sm:$0xff]
    %v332 = vld [vmem:[#allocation13 + $0x28] sm:$0xff]
    %v333 = vld [vmem:[#allocation13 + $0x30] sm:$0xff]
    %v334 = vld [vmem:[#allocation13 + $0x38] sm:$0xff]
    %v335 = vld [vmem:[#allocation13 + $0x40] sm:$0xff]
    %v336 = vld [vmem:[#allocation13 + $0x48] sm:$0xff]
    %v337 = vld [vmem:[#allocation13 + $0x50] sm:$0xff]
    %v338 = vld [vmem:[#allocation13 + $0x58] sm:$0xff]
    %v339 = vld [vmem:[#allocation13 + $0x60] sm:$0xff]
    %v340 = vld [vmem:[#allocation13 + $0x68] sm:$0xff]
    %v341 = vld [vmem:[#allocation13 + $0x70] sm:$0xff]
    %v342 = vld [vmem:[#allocation13 + $0x78] sm:$0xff]
    %v343 = vld [vmem:[%s9] sm:$0x1]
    %v345 = vperm.slane %v343, 0
    %347 = vmatpush.msra.mxu0 %v342
    %348 = vmatpush.msra.mxu0 %v341
    %349 = vmatpush.msra.mxu0 %v340
    %350 = vmatpush.msra.mxu0 %v339
    %351 = vmatpush.msra.mxu0 %v338
    %352 = vmatpush.msra.mxu0 %v337
    %353 = vmatpush.msra.mxu0 %v336
    %354 = vmatpush.msra.mxu0 %v335
    %355 = vmatpush.msra.mxu0 %v334
    %356 = vmatpush.msra.mxu0 %v333
    %357 = vmatpush.msra.mxu0 %v332
    %358 = vmatpush.msra.mxu0 %v331
    %359 = vmatpush.msra.mxu0 %v330
    %360 = vmatpush.msra.mxu0 %v329
    %361 = vmatpush.msra.mxu0 %v328
    %362 = vmatpush.msra.mxu0 %v327
    %363 = vmatmul.f32.gmra.mxu0 %v325
    %v364 = vpop.f32.mrf.mxu0
    %v365 = vadd.f32 %v345, %v364
    %366 = vmatmul.f32.gmra.mxu0 %v326
    %v367 = vpop.f32.mrf.mxu0
    %v368 = vadd.f32 %v345, %v367
    %369 = vdwg.mxu0
    %v370 = vld [vmem:[#allocation14] sm:$0xff]
    %v371 = vld [vmem:[#allocation14 + $0x8] sm:$0xff]
    %v372 = vld [vmem:[#allocation14 + $0x10] sm:$0xff]
    %v373 = vld [vmem:[#allocation14 + $0x18] sm:$0xff]
    %v374 = vld [vmem:[#allocation14 + $0x20] sm:$0xff]
    %v375 = vld [vmem:[#allocation14 + $0x28] sm:$0xff]
    %v376 = vld [vmem:[#allocation14 + $0x30] sm:$0xff]
    %v377 = vld [vmem:[#allocation14 + $0x38] sm:$0xff]
    %v378 = vld [vmem:[#allocation14 + $0x40] sm:$0xff]
    %v379 = vld [vmem:[#allocation14 + $0x48] sm:$0xff]
    %v380 = vld [vmem:[#allocation14 + $0x50] sm:$0xff]
    %v381 = vld [vmem:[#allocation14 + $0x58] sm:$0xff]
    %v382 = vld [vmem:[#allocation14 + $0x60] sm:$0xff]
    %v383 = vld [vmem:[#allocation14 + $0x68] sm:$0xff]
    %v384 = vld [vmem:[#allocation14 + $0x70] sm:$0xff]
    %v385 = vld [vmem:[#allocation14 + $0x78] sm:$0xff]
    %v386 = vld [vmem:[%s11] sm:$0x1]
    %v388 = vperm.slane %v386, 0
    %390 = vmatpush.msra.mxu0 %v385
    %391 = vmatpush.msra.mxu0 %v384
    %392 = vmatpush.msra.mxu0 %v383
    %393 = vmatpush.msra.mxu0 %v382
    %394 = vmatpush.msra.mxu0 %v381
    %395 = vmatpush.msra.mxu0 %v380
    %396 = vmatpush.msra.mxu0 %v379
    %397 = vmatpush.msra.mxu0 %v378
    %398 = vmatpush.msra.mxu0 %v377
    %399 = vmatpush.msra.mxu0 %v376
    %400 = vmatpush.msra.mxu0 %v375
    %401 = vmatpush.msra.mxu0 %v374
    %402 = vmatpush.msra.mxu0 %v373
    %403 = vmatpush.msra.mxu0 %v372
    %404 = vmatpush.msra.mxu0 %v371
    %405 = vmatpush.msra.mxu0 %v370
    %406 = vmatmul.f32.gmra.mxu0 %v325
    %v407 = vpop.f32.mrf.mxu0
    %v408 = vadd.f32 %v388, %v407
    %409 = vmatmul.f32.gmra.mxu0 %v326
    %v410 = vpop.f32.mrf.mxu0
    %v411 = vadd.f32 %v388, %v410
    %412 = vdwg.mxu0
    %v413 = vtanh.pop %v408
    %v414 = vtanh.pop %v411
    %v415 = vsub.f32 %v413, %v190
    %v416 = vsub.f32 %v414, %v191
    %v417 = vmul.f32 %v415, %v415
    %v418 = vmul.f32 %v416, %v416
    %vm419 = vcmask 1045504
    %v420 = vsel %vm419, %v418, 0.0
    %v421 = vadd.f32 %v417, %v420
    %422 = vadd.xlane.f32.xlu0 %v421
    %v423 = vpop.xlane.xlu0 %422
    %v424 = vrot.slane %v423, 4
    %v425 = vadd.f32 %v423, %v424
    %v426 = vrot.slane %v425, 2
    %v427 = vadd.f32 %v425, %v426
    %v428 = vrot.slane %v427, 1
    %v429 = vadd.f32 %v427, %v428
    %s430 = vtos %v429
    %s431 = smul.f32 %s430, 0.008928572
    %v432 = vld [vmem:[#allocation16] sm:$0xff]
    %v433 = vld [vmem:[#allocation16 + $0x8] sm:$0xff]
    %v434 = vld [vmem:[#allocation16 + $0x10] sm:$0xff]
    %v435 = vld [vmem:[#allocation16 + $0x18] sm:$0xff]
    %v436 = vld [vmem:[#allocation16 + $0x20] sm:$0xff]
    %v437 = vld [vmem:[#allocation16 + $0x28] sm:$0xff]
    %v438 = vld [vmem:[#allocation16 + $0x30] sm:$0xff]
    %v439 = vld [vmem:[#allocation16 + $0x38] sm:$0xff]
    %v440 = vld [vmem:[#allocation16 + $0x40] sm:$0xff]
    %v441 = vld [vmem:[#allocation16 + $0x48] sm:$0xff]
    %v442 = vld [vmem:[#allocation16 + $0x50] sm:$0xff]
    %v443 = vld [vmem:[#allocation16 + $0x58] sm:$0xff]
    %v444 = vld [vmem:[#allocation16 + $0x60] sm:$0xff]
    %v445 = vld [vmem:[#allocation16 + $0x68] sm:$0xff]
    %v446 = vld [vmem:[#allocation16 + $0x70] sm:$0xff]
    %v447 = vld [vmem:[#allocation16 + $0x78] sm:$0xff]
    %v448 = vld [vmem:[%s13] sm:$0x1]
    %v450 = vperm.slane %v448, 0
    %452 = vmatpush.msra.mxu0 %v447
    %453 = vmatpush.msra.mxu0 %v446
    %454 = vmatpush.msra.mxu0 %v445
    %455 = vmatpush.msra.mxu0 %v444
    %456 = vmatpush.msra.mxu0 %v443
    %457 = vmatpush.msra.mxu0 %v442
    %458 = vmatpush.msra.mxu0 %v441
    %459 = vmatpush.msra.mxu0 %v440
    %460 = vmatpush.msra.mxu0 %v439
    %461 = vmatpush.msra.mxu0 %v438
    %462 = vmatpush.msra.mxu0 %v437
    %463 = vmatpush.msra.mxu0 %v436
    %464 = vmatpush.msra.mxu0 %v435
    %465 = vmatpush.msra.mxu0 %v434
    %466 = vmatpush.msra.mxu0 %v433
    %467 = vmatpush.msra.mxu0 %v432
    %468 = vmatmul.f32.gmra.mxu0 %v365
    %v469 = vpop.f32.mrf.mxu0
    %v470 = vadd.f32 %v450, %v469
    %471 = vmatmul.f32.gmra.mxu0 %v368
    %v472 = vpop.f32.mrf.mxu0
    %v473 = vadd.f32 %v450, %v472
    %474 = vdwg.mxu0
    %v475 = vadd.f32 %v470, %v192
    %v476 = vadd.f32 %v473, %v193
    %v477 = vsub.f32 %v475, %v188
    %v478 = vsub.f32 %v476, %v189
    %v479 = vmul.f32 %v477, %v477
    %v480 = vmul.f32 %v478, %v478
    %v481 = vsel %vm419, %v480, 0.0
    %v482 = vadd.f32 %v479, %v481
    %483 = vadd.xlane.f32.xlu0 %v482
    %v484 = vpop.xlane.xlu0 %483
    %v485 = vrot.slane %v484, 4
    %v486 = vadd.f32 %v484, %v485
    %v487 = vrot.slane %v486, 2
    %v488 = vadd.f32 %v486, %v487
    %v489 = vrot.slane %v488, 1
    %v490 = vadd.f32 %v488, %v489
    %s491 = vtos %v490
    %s492 = smul.f32 %s491, 0.0029761905
    %s493 = sadd.f32 %s431, %s492
    %v494 = vstv %s493
    %vm495 = vcmask 0
    %496 = vst.msk [vmem:[#allocation17] sm:$0x1] %vm495, %v494
    // Predicated region
    $region94: #{tpu_custom_call.1} parent=1 // pred_check
      _
    $region95: #{tpu_custom_call.1} parent=1 // pred_check_branch
      %498 = sbr.rel (0) target = $region97
    $region96: #{tpu_custom_call.1} parent=1 // pred_region
      %500 = vsyncadd [#allocation4], 0
      %s502 = sshll.u32 [#allocation17], 4
      %s503 = int_to_ptr.vmem [resolvable:$true] %s502
      %s504 = sshll.u32 %s14, 4
      %s505 = int_to_ptr.hbm [resolvable:$true] %s504
      %507 = dma.vmem_to_hbm [thread:$0]  %s503, 16, %s505, [#allocation4]
    $region97: #{tpu_custom_call.1} parent=1 // pred_fallthru
      _
    // Predicated region
    $region98: #{tpu_custom_call.1} parent=1 // pred_check
      _
    $region99: #{tpu_custom_call.1} parent=1 // pred_check_branch
      %509 = sbr.rel (0) target = $region101
    $region100: #{tpu_custom_call.1} parent=1 // pred_region
      %511 = dma.done [#allocation4], 16
    $region101: #{tpu_custom_call.1} parent=1 // pred_fallthru
      _
    %512 = vsyncpa [#allocation3], 1
    %513 = vsyncpa [#allocation6], 1
    %514 = vsyncpa [#allocation9], 1
    %515 = vsyncpa [#allocation12], 1
    %516 = vsyncpa [#allocation15], 1
    %517 = vsyncpa [#allocation4], 1

</llo_original>
